<compile_context>
chip_gen: v5e
topology: v5e:2x2
jax: 0.10.0
libtpu: 0.0.40
codegen_flags: <defaults>
</compile_context>

<pallas_src>
import math
import numpy as np
import jax
import jax.numpy as jnp
from jax import lax
from jax.experimental import pallas as pl
from jax.experimental.pallas import tpu as pltpu

# ----- config (small, consistent with the module) -----
B, S, D, H = 2, 8, 32, 4           # batch, seq, n_embd, num_attention_heads
DH = D // H                         # head_dim
BS = B * S                          # flattened (batch, seq) rows = 16
T = H * BS                          # stacked (head, batch, seq) attention rows = 64
INNER = 4 * D                       # n_inner = 4 * n_embd = 128
NF = INNER + 5 * D                  # fused projection width = 288
EPS = 1e-5                          # layer_norm_epsilon
MASK_NEG = -1e30                    # additive mask value (safe w.r.t. exp underflow)


def _gelu_new(x):
    # ACT2FN["gelu_new"] (tanh approximation)
    return 0.5 * x * (1.0 + jnp.tanh(math.sqrt(2.0 / math.pi) * (x + 0.044715 * x * x * x)))


# ----------------------------- Pallas kernel -----------------------------
def newgpt_block_kernel(x_ref, lnw_ref, lnb_ref, wall_ref, sin_ref, cos_ref,
                        madd_ref, lmask_ref, wo_ref, b1_ref, w2_ref, b2_ref,
                        out_ref):
    x = x_ref[...]                                    # (BS, D) f32, residual

    # ---- LayerNorm (ln_1), f32 ----
    mean = jnp.mean(x, axis=-1, keepdims=True)
    xc = x - mean
    var = jnp.mean(xc * xc, axis=-1, keepdims=True)
    h = xc * lax.rsqrt(var + EPS) * lnw_ref[...] + lnb_ref[...]
    h_b = h.astype(jnp.bfloat16)

    # ---- ONE fused matmul: [fc_in | Wq*scale | Wk | Wv | (Wq*scale)@P | Wk@P] ----
    f = jnp.dot(h_b, wall_ref[...], preferred_element_type=jnp.float32)   # (BS, NF) f32
    m1  = f[:, 0:INNER] + b1_ref[...]                 # fc_in output
    q   = f[:, INNER + 0 * D:INNER + 1 * D]           # already * 1/sqrt(head_dim)
    k   = f[:, INNER + 1 * D:INNER + 2 * D]
    v   = f[:, INNER + 2 * D:INNER + 3 * D]
    q_p = f[:, INNER + 3 * D:INNER + 4 * D]           # q @ P  (rotate_every_two, unsigned)
    k_p = f[:, INNER + 4 * D:INNER + 5 * D]           # k @ P

    # ---- rotary: x*cos + rotate_every_two(x)*sin  (sign folded into sin table) ----
    sin = sin_ref[...]
    cos = cos_ref[...]
    q_rope = q * cos + q_p * sin
    k_rope = k * cos + k_p * sin

    # ---- block-diagonal attention: all (head, batch) softmaxes at once ----
    lmask = lmask_ref[...]                            # (T, D): row block h keeps head-h lanes
    q_b = q_rope.astype(jnp.bfloat16)
    q_t = jnp.concatenate([q_b] * H, axis=0)          # (T, D) bf16, rows = (h, b, s)
    k_t = jnp.concatenate([k_rope] * H, axis=0)       # (T, D) f32
    k_m = (k_t * lmask).astype(jnp.bfloat16)          # restrict contraction to head lanes

    scores = lax.dot_general(q_t, k_m, (((1,), (1,)), ((), ())),
                             preferred_element_type=jnp.float32)          # (T, T)
    scores = scores + madd_ref[...]                   # causal + head/batch block-diag mask
    smax = jnp.max(scores, axis=-1, keepdims=True)
    e = jnp.exp(scores - smax)
    p = e * pl.reciprocal(jnp.sum(e, axis=-1, keepdims=True), approx=True)

    v_t = jnp.concatenate([v.astype(jnp.bfloat16)] * H, axis=0)           # (T, D) bf16
    pv = jnp.dot(p.astype(jnp.bfloat16), v_t, preferred_element_type=jnp.float32)  # (T, D)
    pv = pv * lmask                                   # row block h -> keep head-h lanes
    attn = pv[0:BS] + pv[BS:2 * BS] + pv[2 * BS:3 * BS] + pv[3 * BS:4 * BS]  # merge heads

    attn_out = jnp.dot(attn.astype(jnp.bfloat16), wo_ref[...],
                       preferred_element_type=jnp.float32)                # (BS, D)

    # ---- MLP (gelu_new) on the LayerNorm output ----
    mlp = jnp.dot(_gelu_new(m1).astype(jnp.bfloat16), w2_ref[...],
                  preferred_element_type=jnp.float32) + b2_ref[...]

    # TODO(synk): resid/mlp dropout are identity (eval mode); use_cache / layer_past /
    #             output_attentions auxiliary outputs are not produced.
    out_ref[...] = attn_out + mlp + x


# ----------------------------- wrapper -----------------------------
def _rotary_tables():
    inv_freq = 1.0 / (10000.0 ** (np.arange(0, DH, 2, dtype=np.float32) / DH))
    pos = np.arange(S, dtype=np.float32)
    sinusoid = np.einsum("i,j->ij", pos, inv_freq)            # (S, DH//2)
    sin_i = np.repeat(np.sin(sinusoid), 2, axis=1)            # duplicate_interleave -> (S, DH)
    cos_i = np.repeat(np.cos(sinusoid), 2, axis=1)
    return sin_i, cos_i


def _prepare_constants():
    sin_i, cos_i = _rotary_tables()
    # sign of rotate_every_two folded into sin, tiled across heads then batch rows
    sign = np.where(np.arange(DH) % 2 == 0, -1.0, 1.0).astype(np.float32)
    sin_t = np.tile(np.tile(sin_i * sign, (1, H)), (B, 1))    # (BS, D)
    cos_t = np.tile(np.tile(cos_i, (1, H)), (B, 1))           # (BS, D)

    # adjacent-swap permutation: (x @ P)[j] = x[j ^ 1]
    idx = np.arange(D)
    P = np.zeros((D, D), np.float32)
    P[idx ^ 1, idx] = 1.0

    # additive mask over stacked rows r = h*BS + b*S + s (causal + head/batch block-diag)
    r = np.arange(T)
    rh, rb, rs = r // BS, (r % BS) // S, r % S
    allowed = (rh[:, None] == rh[None, :]) & (rb[:, None] == rb[None, :]) \
              & (rs[None, :] <= rs[:, None])
    mask_add = np.where(allowed, 0.0, MASK_NEG).astype(np.float32)       # (T, T)

    # head-lane selector: row block h keeps lanes [h*DH, (h+1)*DH)
    lane_mask = np.zeros((T, D), np.float32)
    for hh in range(H):
        lane_mask[hh * BS:(hh + 1) * BS, hh * DH:(hh + 1) * DH] = 1.0

    return (jnp.asarray(sin_t), jnp.asarray(cos_t), jnp.asarray(P),
            jnp.asarray(mask_add), jnp.asarray(lane_mask),
            jnp.asarray(sin_i), jnp.asarray(cos_i))


def newgpt_block(x, params, sin_t, cos_t, P, mask_add, lane_mask):
    scale = 1.0 / math.sqrt(DH)
    wq_s = params["wq"] * scale                                # fold 1/sqrt(head_dim) into Q
    w_all = jnp.concatenate(
        [params["w1"], wq_s, params["wk"], params["wv"], wq_s @ P, params["wk"] @ P],
        axis=1).astype(jnp.bfloat16)                           # (D, NF) fused weight

    x2d = x.reshape(BS, D)
    const = lambda i: (0, 0)
    out = pl.pallas_call(
        newgpt_block_kernel,
        out_shape=jax.ShapeDtypeStruct((BS, D), jnp.float32),
        grid_spec=pltpu.PrefetchScalarGridSpec(
            num_scalar_prefetch=0,
            grid=(1,),                                         # whole block in one step
            in_specs=[
                pl.BlockSpec((BS, D), const),                  # x (residual)
                pl.BlockSpec((1, D), const),                   # ln_w
                pl.BlockSpec((1, D), const),                   # ln_b
                pl.BlockSpec((D, NF), const),                  # fused projection weight (bf16)
                pl.BlockSpec((BS, D), const),                  # sin (sign-folded, tiled)
                pl.BlockSpec((BS, D), const),                  # cos (tiled)
                pl.BlockSpec((T, T), const),                   # additive attention mask
                pl.BlockSpec((T, D), const),                   # head-lane mask
                pl.BlockSpec((D, D), const),                   # out_proj (bf16)
                pl.BlockSpec((1, INNER), const),               # fc_in bias
                pl.BlockSpec((INNER, D), const),               # fc_out weight (bf16)
                pl.BlockSpec((1, D), const),                   # fc_out bias
            ],
            out_specs=pl.BlockSpec((BS, D), const),
        ),
        compiler_params=pltpu.CompilerParams(dimension_semantics=("arbitrary",)),
    )(x2d, params["ln_w"], params["ln_b"], w_all, sin_t, cos_t,
      mask_add, lane_mask, params["wo"].astype(jnp.bfloat16),
      params["b1"], params["w2"].astype(jnp.bfloat16), params["b2"])
    return out.reshape(B, S, D)


# ----------------------------- pure-JAX f32 reference -----------------------------
def reference(x, params, sin_i, cos_i, mask_bool):
    mean = jnp.mean(x, axis=-1, keepdims=True)
    var = jnp.mean((x - mean) ** 2, axis=-1, keepdims=True)
    h = (x - mean) / jnp.sqrt(var + EPS) * params["ln_w"][0] + params["ln_b"][0]

    q = h @ params["wq"]
    k = h @ params["wk"]
    v = h @ params["wv"]
    split = lambda t: t.reshape(B, S, H, DH).transpose(0, 2, 1, 3)     # (B,H,S,DH)
    qs, ks, vs = split(q), split(k), split(v)

    def rot_every_two(t):
        t1 = t[..., ::2]
        t2 = t[..., 1::2]
        return jnp.stack([-t2, t1], axis=-1).reshape(t.shape)

    apply_rope = lambda t: t * cos_i[None, None] + rot_every_two(t) * sin_i[None, None]
    qs, ks = apply_rope(qs), apply_rope(ks)

    scores = jnp.einsum("bhqd,bhkd->bhqk", qs, ks) / math.sqrt(DH)
    scores = jnp.where(mask_bool[None, None], float(jnp.finfo(jnp.float32).min), scores)
    p = jax.nn.softmax(scores, axis=-1)
    ao = jnp.einsum("bhqk,bhkd->bhqd", p, vs)
    ao = ao.transpose(0, 2, 1, 3).reshape(B, S, D) @ params["wo"]

    m = _gelu_new(h @ params["w1"] + params["b1"][0]) @ params["w2"] + params["b2"][0]
    return ao + m + x


# ----------------------------- setup / main -----------------------------
def make_params(key):
    ks = jax.random.split(key, 10)
    std = 0.02
    return {
        "ln_w": 1.0 + 0.1 * jax.random.normal(ks[8], (1, D), jnp.float32),
        "ln_b": 0.1 * jax.random.normal(ks[9], (1, D), jnp.float32),
        "wq": std * jax.random.normal(ks[0], (D, D), jnp.float32),
        "wk": std * jax.random.normal(ks[1], (D, D), jnp.float32),
        "wv": std * jax.random.normal(ks[2], (D, D), jnp.float32),
        "wo": std * jax.random.normal(ks[3], (D, D), jnp.float32),
        "w1": std * jax.random.normal(ks[4], (D, INNER), jnp.float32),
        "b1": std * jax.random.normal(ks[5], (1, INNER), jnp.float32),
        "w2": std * jax.random.normal(ks[6], (INNER, D), jnp.float32),
        "b2": std * jax.random.normal(ks[7], (1, D), jnp.float32),
    }


if __name__ == "__main__":
    key = jax.random.PRNGKey(0)
    kx, kp = jax.random.split(key)
    x = jax.random.normal(kx, (B, S, D), jnp.float32)
    params = make_params(kp)

    sin_t, cos_t, P, mask_add, lane_mask, sin_i, cos_i = _prepare_constants()

    out = newgpt_block(x, params, sin_t, cos_t, P, mask_add, lane_mask)
    out = jax.block_until_ready(out)

    mask_bool = jnp.asarray(np.triu(np.ones((S, S), dtype=bool), k=1))   # True => masked
    ref = reference(x, params, sin_i, cos_i, mask_bool)
    np.testing.assert_allclose(np.asarray(out), np.asarray(ref), rtol=5e-3, atol=5e-3)
    print("KERNEL_OK")
</pallas_src>

<mosaic_0001>
module attributes {stable_mosaic.version = 11 : i64} {
  func.func @newgpt_block_kernel(%arg0: i32, %arg1: memref<16x32xf32, #tpu.memory_space<vmem>>, %arg2: memref<1x32xf32, #tpu.memory_space<vmem>>, %arg3: memref<1x32xf32, #tpu.memory_space<vmem>>, %arg4: memref<32x288xbf16, #tpu.memory_space<vmem>>, %arg5: memref<16x32xf32, #tpu.memory_space<vmem>>, %arg6: memref<16x32xf32, #tpu.memory_space<vmem>>, %arg7: memref<64x64xf32, #tpu.memory_space<vmem>>, %arg8: memref<64x32xf32, #tpu.memory_space<vmem>>, %arg9: memref<32x32xbf16, #tpu.memory_space<vmem>>, %arg10: memref<1x128xf32, #tpu.memory_space<vmem>>, %arg11: memref<128x32xbf16, #tpu.memory_space<vmem>>, %arg12: memref<1x32xf32, #tpu.memory_space<vmem>>, %arg13: memref<16x32xf32, #tpu.memory_space<vmem>>) attributes {dimension_semantics = [#tpu.dimension_semantics<arbitrary>], iteration_bounds = array<i64: 1>, scalar_prefetch = 0 : i64, scratch_operands = 0 : i64, tpu.core_type = #tpu.core_type<tc>, window_params = [{pipeline_mode = #tpu.pipeline_mode<synchronous>, transform_indices = @transform_0, window_bounds = array<i64: 16, 32>}, {pipeline_mode = #tpu.pipeline_mode<synchronous>, transform_indices = @transform_1, window_bounds = array<i64: 1, 32>}, {pipeline_mode = #tpu.pipeline_mode<synchronous>, transform_indices = @transform_2, window_bounds = array<i64: 1, 32>}, {pipeline_mode = #tpu.pipeline_mode<synchronous>, transform_indices = @transform_3, window_bounds = array<i64: 32, 288>}, {pipeline_mode = #tpu.pipeline_mode<synchronous>, transform_indices = @transform_4, window_bounds = array<i64: 16, 32>}, {pipeline_mode = #tpu.pipeline_mode<synchronous>, transform_indices = @transform_5, window_bounds = array<i64: 16, 32>}, {pipeline_mode = #tpu.pipeline_mode<synchronous>, transform_indices = @transform_6, window_bounds = array<i64: 64, 64>}, {pipeline_mode = #tpu.pipeline_mode<synchronous>, transform_indices = @transform_7, window_bounds = array<i64: 64, 32>}, {pipeline_mode = #tpu.pipeline_mode<synchronous>, transform_indices = @transform_8, window_bounds = array<i64: 32, 32>}, {pipeline_mode = #tpu.pipeline_mode<synchronous>, transform_indices = @transform_9, window_bounds = array<i64: 1, 128>}, {pipeline_mode = #tpu.pipeline_mode<synchronous>, transform_indices = @transform_10, window_bounds = array<i64: 128, 32>}, {pipeline_mode = #tpu.pipeline_mode<synchronous>, transform_indices = @transform_11, window_bounds = array<i64: 1, 32>}, {pipeline_mode = #tpu.pipeline_mode<synchronous>, transform_indices = @transform_12, window_bounds = array<i64: 16, 32>}]} {
    %c0 = arith.constant 0 : index
    %c0_0 = arith.constant 0 : index
    %0 = vector.load %arg1[%c0, %c0_0] : memref<16x32xf32, #tpu.memory_space<vmem>>, vector<16x32xf32>
    %cst = arith.constant dense<0.000000e+00> : vector<16xf32>
    %1 = vector.multi_reduction <add>, %0, %cst [1] : vector<16x32xf32> to vector<16xf32>
    %2 = vector.shape_cast %1 : vector<16xf32> to vector<16x1xf32>
    %cst_1 = arith.constant 3.200000e+01 : f32
    %3 = vector.broadcast %cst_1 : f32 to vector<16x1xf32>
    %4 = arith.divf %2, %3 : vector<16x1xf32>
    %5 = vector.broadcast %4 : vector<16x1xf32> to vector<16x32xf32>
    %6 = arith.subf %0, %5 : vector<16x32xf32>
    %7 = arith.mulf %6, %6 : vector<16x32xf32>
    %cst_2 = arith.constant dense<0.000000e+00> : vector<16xf32>
    %8 = vector.multi_reduction <add>, %7, %cst_2 [1] : vector<16x32xf32> to vector<16xf32>
    %9 = vector.shape_cast %8 : vector<16xf32> to vector<16x1xf32>
    %cst_3 = arith.constant 3.200000e+01 : f32
    %10 = vector.broadcast %cst_3 : f32 to vector<16x1xf32>
    %11 = arith.divf %9, %10 : vector<16x1xf32>
    %cst_4 = arith.constant 9.99999974E-6 : f32
    %12 = vector.broadcast %cst_4 : f32 to vector<16x1xf32>
    %13 = arith.addf %11, %12 : vector<16x1xf32>
    %14 = math.rsqrt %13 : vector<16x1xf32>
    %15 = vector.broadcast %14 : vector<16x1xf32> to vector<16x32xf32>
    %16 = arith.mulf %6, %15 : vector<16x32xf32>
    %c0_5 = arith.constant 0 : index
    %c0_6 = arith.constant 0 : index
    %17 = vector.load %arg2[%c0_5, %c0_6] : memref<1x32xf32, #tpu.memory_space<vmem>>, vector<1x32xf32>
    %18 = vector.broadcast %17 : vector<1x32xf32> to vector<16x32xf32>
    %19 = arith.mulf %16, %18 : vector<16x32xf32>
    %c0_7 = arith.constant 0 : index
    %c0_8 = arith.constant 0 : index
    %20 = vector.load %arg3[%c0_7, %c0_8] : memref<1x32xf32, #tpu.memory_space<vmem>>, vector<1x32xf32>
    %21 = vector.broadcast %20 : vector<1x32xf32> to vector<16x32xf32>
    %22 = arith.addf %19, %21 : vector<16x32xf32>
    %23 = arith.truncf %22 : vector<16x32xf32> to vector<16x32xbf16>
    %c0_9 = arith.constant 0 : index
    %c0_10 = arith.constant 0 : index
    %24 = vector.load %arg4[%c0_9, %c0_10] : memref<32x288xbf16, #tpu.memory_space<vmem>>, vector<32x288xbf16>
    %cst_11 = arith.constant dense<0.000000e+00> : vector<16x288xf32>
    %25 = tpu.matmul %23, %24, %cst_11 {dimension_numbers = #tpu.dot_dimension_numbers<[1], [0], [0], [1], [0, 0, 1, 1], [], []>} : vector<16x32xbf16>, vector<32x288xbf16>, vector<16x288xf32> -> vector<16x288xf32>
    %26 = vector.extract_strided_slice %25 {offsets = [0, 0], sizes = [16, 128], strides = [1, 1]} : vector<16x288xf32> to vector<16x128xf32>
    %c0_12 = arith.constant 0 : index
    %c0_13 = arith.constant 0 : index
    %27 = vector.load %arg10[%c0_12, %c0_13] : memref<1x128xf32, #tpu.memory_space<vmem>>, vector<1x128xf32>
    %28 = vector.broadcast %27 : vector<1x128xf32> to vector<16x128xf32>
    %29 = arith.addf %26, %28 : vector<16x128xf32>
    %30 = vector.extract_strided_slice %25 {offsets = [0, 128], sizes = [16, 32], strides = [1, 1]} : vector<16x288xf32> to vector<16x32xf32>
    %31 = vector.extract_strided_slice %25 {offsets = [0, 160], sizes = [16, 32], strides = [1, 1]} : vector<16x288xf32> to vector<16x32xf32>
    %32 = vector.extract_strided_slice %25 {offsets = [0, 192], sizes = [16, 32], strides = [1, 1]} : vector<16x288xf32> to vector<16x32xf32>
    %33 = vector.extract_strided_slice %25 {offsets = [0, 224], sizes = [16, 32], strides = [1, 1]} : vector<16x288xf32> to vector<16x32xf32>
    %34 = vector.extract_strided_slice %25 {offsets = [0, 256], sizes = [16, 32], strides = [1, 1]} : vector<16x288xf32> to vector<16x32xf32>
    %c0_14 = arith.constant 0 : index
    %c0_15 = arith.constant 0 : index
    %35 = vector.load %arg5[%c0_14, %c0_15] : memref<16x32xf32, #tpu.memory_space<vmem>>, vector<16x32xf32>
    %c0_16 = arith.constant 0 : index
    %c0_17 = arith.constant 0 : index
    %36 = vector.load %arg6[%c0_16, %c0_17] : memref<16x32xf32, #tpu.memory_space<vmem>>, vector<16x32xf32>
    %37 = arith.mulf %30, %36 : vector<16x32xf32>
    %38 = arith.mulf %33, %35 : vector<16x32xf32>
    %39 = arith.addf %37, %38 : vector<16x32xf32>
    %40 = arith.mulf %31, %36 : vector<16x32xf32>
    %41 = arith.mulf %34, %35 : vector<16x32xf32>
    %42 = arith.addf %40, %41 : vector<16x32xf32>
    %c0_18 = arith.constant 0 : index
    %c0_19 = arith.constant 0 : index
    %43 = vector.load %arg8[%c0_18, %c0_19] : memref<64x32xf32, #tpu.memory_space<vmem>>, vector<64x32xf32>
    %44 = arith.truncf %39 : vector<16x32xf32> to vector<16x32xbf16>
    %45 = tpu.concatenate %44, %44, %44, %44 in 0 : vector<16x32xbf16>, vector<16x32xbf16>, vector<16x32xbf16>, vector<16x32xbf16> -> vector<64x32xbf16>
    %46 = tpu.concatenate %42, %42, %42, %42 in 0 : vector<16x32xf32>, vector<16x32xf32>, vector<16x32xf32>, vector<16x32xf32> -> vector<64x32xf32>
    %47 = arith.mulf %46, %43 : vector<64x32xf32>
    %48 = arith.truncf %47 : vector<64x32xf32> to vector<64x32xbf16>
    %cst_20 = arith.constant dense<0.000000e+00> : vector<64x64xf32>
    %49 = tpu.matmul %45, %48, %cst_20 {dimension_numbers = #tpu.dot_dimension_numbers<[1], [1], [0], [0], [0, 0, 1, 0], [], []>} : vector<64x32xbf16>, vector<64x32xbf16>, vector<64x64xf32> -> vector<64x64xf32>
    %c0_21 = arith.constant 0 : index
    %c0_22 = arith.constant 0 : index
    %50 = vector.load %arg7[%c0_21, %c0_22] : memref<64x64xf32, #tpu.memory_space<vmem>>, vector<64x64xf32>
    %51 = arith.addf %49, %50 : vector<64x64xf32>
    %cst_23 = arith.constant dense<0xFF800000> : vector<64xf32>
    %52 = vector.multi_reduction <maximumf>, %51, %cst_23 [1] : vector<64x64xf32> to vector<64xf32>
    %53 = vector.shape_cast %52 : vector<64xf32> to vector<64x1xf32>
    %54 = vector.broadcast %53 : vector<64x1xf32> to vector<64x64xf32>
    %55 = arith.subf %51, %54 : vector<64x64xf32>
    %56 = math.exp %55 : vector<64x64xf32>
    %cst_24 = arith.constant dense<0.000000e+00> : vector<64xf32>
    %57 = vector.multi_reduction <add>, %56, %cst_24 [1] : vector<64x64xf32> to vector<64xf32>
    %58 = vector.shape_cast %57 : vector<64xf32> to vector<64x1xf32>
    %59 = tpu.reciprocal %58 {approx = true} : vector<64x1xf32> -> vector<64x1xf32>
    %60 = vector.broadcast %59 : vector<64x1xf32> to vector<64x64xf32>
    %61 = arith.mulf %56, %60 : vector<64x64xf32>
    %62 = arith.truncf %32 : vector<16x32xf32> to vector<16x32xbf16>
    %63 = tpu.concatenate %62, %62, %62, %62 in 0 : vector<16x32xbf16>, vector<16x32xbf16>, vector<16x32xbf16>, vector<16x32xbf16> -> vector<64x32xbf16>
    %64 = arith.truncf %61 : vector<64x64xf32> to vector<64x64xbf16>
    %cst_25 = arith.constant dense<0.000000e+00> : vector<64x32xf32>
    %65 = tpu.matmul %64, %63, %cst_25 {dimension_numbers = #tpu.dot_dimension_numbers<[1], [0], [0], [1], [0, 0, 1, 1], [], []>} : vector<64x64xbf16>, vector<64x32xbf16>, vector<64x32xf32> -> vector<64x32xf32>
    %66 = arith.mulf %65, %43 : vector<64x32xf32>
    %67 = vector.extract_strided_slice %66 {offsets = [0, 0], sizes = [16, 32], strides = [1, 1]} : vector<64x32xf32> to vector<16x32xf32>
    %68 = vector.extract_strided_slice %66 {offsets = [16, 0], sizes = [16, 32], strides = [1, 1]} : vector<64x32xf32> to vector<16x32xf32>
    %69 = arith.addf %67, %68 : vector<16x32xf32>
    %70 = vector.extract_strided_slice %66 {offsets = [32, 0], sizes = [16, 32], strides = [1, 1]} : vector<64x32xf32> to vector<16x32xf32>
    %71 = arith.addf %69, %70 : vector<16x32xf32>
    %72 = vector.extract_strided_slice %66 {offsets = [48, 0], sizes = [16, 32], strides = [1, 1]} : vector<64x32xf32> to vector<16x32xf32>
    %73 = arith.addf %71, %72 : vector<16x32xf32>
    %74 = arith.truncf %73 : vector<16x32xf32> to vector<16x32xbf16>
    %c0_26 = arith.constant 0 : index
    %c0_27 = arith.constant 0 : index
    %75 = vector.load %arg9[%c0_26, %c0_27] : memref<32x32xbf16, #tpu.memory_space<vmem>>, vector<32x32xbf16>
    %cst_28 = arith.constant dense<0.000000e+00> : vector<16x32xf32>
    %76 = tpu.matmul %74, %75, %cst_28 {dimension_numbers = #tpu.dot_dimension_numbers<[1], [0], [0], [1], [0, 0, 1, 1], [], []>} : vector<16x32xbf16>, vector<32x32xbf16>, vector<16x32xf32> -> vector<16x32xf32>
    %cst_29 = arith.constant 5.000000e-01 : f32
    %77 = vector.broadcast %cst_29 : f32 to vector<16x128xf32>
    %78 = arith.mulf %77, %29 : vector<16x128xf32>
    %cst_30 = arith.constant 4.471500e-02 : f32
    %79 = vector.broadcast %cst_30 : f32 to vector<16x128xf32>
    %80 = arith.mulf %79, %29 : vector<16x128xf32>
    %81 = arith.mulf %80, %29 : vector<16x128xf32>
    %82 = arith.mulf %81, %29 : vector<16x128xf32>
    %83 = arith.addf %29, %82 : vector<16x128xf32>
    %cst_31 = arith.constant 0.797884583 : f32
    %84 = vector.broadcast %cst_31 : f32 to vector<16x128xf32>
    %85 = arith.mulf %84, %83 : vector<16x128xf32>
    %86 = math.tanh %85 : vector<16x128xf32>
    %cst_32 = arith.constant 1.000000e+00 : f32
    %87 = vector.broadcast %cst_32 : f32 to vector<16x128xf32>
    %88 = arith.addf %87, %86 : vector<16x128xf32>
    %89 = arith.mulf %78, %88 : vector<16x128xf32>
    %90 = arith.truncf %89 : vector<16x128xf32> to vector<16x128xbf16>
    %c0_33 = arith.constant 0 : index
    %c0_34 = arith.constant 0 : index
    %91 = vector.load %arg11[%c0_33, %c0_34] : memref<128x32xbf16, #tpu.memory_space<vmem>>, vector<128x32xbf16>
    %cst_35 = arith.constant dense<0.000000e+00> : vector<16x32xf32>
    %92 = tpu.matmul %90, %91, %cst_35 {dimension_numbers = #tpu.dot_dimension_numbers<[1], [0], [0], [1], [0, 0, 1, 1], [], []>} : vector<16x128xbf16>, vector<128x32xbf16>, vector<16x32xf32> -> vector<16x32xf32>
    %c0_36 = arith.constant 0 : index
    %c0_37 = arith.constant 0 : index
    %93 = vector.load %arg12[%c0_36, %c0_37] : memref<1x32xf32, #tpu.memory_space<vmem>>, vector<1x32xf32>
    %94 = vector.broadcast %93 : vector<1x32xf32> to vector<16x32xf32>
    %95 = arith.addf %92, %94 : vector<16x32xf32>
    %96 = arith.addf %76, %95 : vector<16x32xf32>
    %97 = arith.addf %96, %0 : vector<16x32xf32>
    %c0_38 = arith.constant 0 : index
    %c0_39 = arith.constant 0 : index
    %98 = vector.load %arg13[%c0_38, %c0_39] : memref<16x32xf32, #tpu.memory_space<vmem>>, vector<16x32xf32>
    tpu.vector_store %arg13[%c0_38, %c0_39], %97 {strides = array<i32>} : memref<16x32xf32, #tpu.memory_space<vmem>>, vector<16x32xf32>,
    return
  }
  func.func @transform_0(%arg0: i32) -> (i32, i32) {
    %c0_i32 = arith.constant 0 : i32
    %c0_i32_0 = arith.constant 0 : i32
    %c0_i32_1 = arith.constant 0 : i32
    return %c0_i32, %c0_i32_0 : i32, i32
  }
  func.func @transform_1(%arg0: i32) -> (i32, i32) {
    %c0_i32 = arith.constant 0 : i32
    %c0_i32_0 = arith.constant 0 : i32
    %c0_i32_1 = arith.constant 0 : i32
    return %c0_i32, %c0_i32_0 : i32, i32
  }
  func.func @transform_2(%arg0: i32) -> (i32, i32) {
    %c0_i32 = arith.constant 0 : i32
    %c0_i32_0 = arith.constant 0 : i32
    %c0_i32_1 = arith.constant 0 : i32
    return %c0_i32, %c0_i32_0 : i32, i32
  }
  func.func @transform_3(%arg0: i32) -> (i32, i32) {
    %c0_i32 = arith.constant 0 : i32
    %c0_i32_0 = arith.constant 0 : i32
    %c0_i32_1 = arith.constant 0 : i32
    return %c0_i32, %c0_i32_0 : i32, i32
  }
  func.func @transform_4(%arg0: i32) -> (i32, i32) {
    %c0_i32 = arith.constant 0 : i32
    %c0_i32_0 = arith.constant 0 : i32
    %c0_i32_1 = arith.constant 0 : i32
    return %c0_i32, %c0_i32_0 : i32, i32
  }
  func.func @transform_5(%arg0: i32) -> (i32, i32) {
    %c0_i32 = arith.constant 0 : i32
    %c0_i32_0 = arith.constant 0 : i32
    %c0_i32_1 = arith.constant 0 : i32
    return %c0_i32, %c0_i32_0 : i32, i32
  }
  func.func @transform_6(%arg0: i32) -> (i32, i32) {
    %c0_i32 = arith.constant 0 : i32
    %c0_i32_0 = arith.constant 0 : i32
    %c0_i32_1 = arith.constant 0 : i32
    return %c0_i32, %c0_i32_0 : i32, i32
  }
  func.func @transform_7(%arg0: i32) -> (i32, i32) {
    %c0_i32 = arith.constant 0 : i32
    %c0_i32_0 = arith.constant 0 : i32
    %c0_i32_1 = arith.constant 0 : i32
    return %c0_i32, %c0_i32_0 : i32, i32
  }
  func.func @transform_8(%arg0: i32) -> (i32, i32) {
    %c0_i32 = arith.constant 0 : i32
    %c0_i32_0 = arith.constant 0 : i32
    %c0_i32_1 = arith.constant 0 : i32
    return %c0_i32, %c0_i32_0 : i32, i32
  }
  func.func @transform_9(%arg0: i32) -> (i32, i32) {
    %c0_i32 = arith.constant 0 : i32
    %c0_i32_0 = arith.constant 0 : i32
    %c0_i32_1 = arith.constant 0 : i32
    return %c0_i32, %c0_i32_0 : i32, i32
  }
  func.func @transform_10(%arg0: i32) -> (i32, i32) {
    %c0_i32 = arith.constant 0 : i32
    %c0_i32_0 = arith.constant 0 : i32
    %c0_i32_1 = arith.constant 0 : i32
    return %c0_i32, %c0_i32_0 : i32, i32
  }
  func.func @transform_11(%arg0: i32) -> (i32, i32) {
    %c0_i32 = arith.constant 0 : i32
    %c0_i32_0 = arith.constant 0 : i32
    %c0_i32_1 = arith.constant 0 : i32
    return %c0_i32, %c0_i32_0 : i32, i32
  }
  func.func @transform_12(%arg0: i32) -> (i32, i32) {
    %c0_i32 = arith.constant 0 : i32
    %c0_i32_0 = arith.constant 0 : i32
    %c0_i32_1 = arith.constant 0 : i32
    return %c0_i32, %c0_i32_0 : i32, i32
  }
}

</mosaic_0001>

<llo_original>
// kernel: tpu_custom_call.1
$region0: #{tpu_custom_call.1}
  #allocation0 [shape = 'u32[]', space=smem, size = 0x4, offset = 0x4, fixed_abs, tag = 'smem constant byte address 0x4 - core index']
  #allocation1 [shape = 'u32[72,128]{1,0:T(1,128)}', space=vmem, size = 0x9000, scoped, tag = 'internal scratch']
  %s0 = inlined_call_operand.vmem [shape: f32[16,32], index: 0, kind: input, shape index: {}]
  %s1 = inlined_call_operand.hbm [shape: f32[1,32], index: 1, kind: input, shape index: {}]
  %s2 = inlined_call_operand.vmem [shape: f32[1,32], index: 2, kind: input, shape index: {}]
  %s3 = inlined_call_operand.vmem [shape: bf16[32,288], index: 3, kind: input, shape index: {}]
  %s4 = inlined_call_operand.vmem [shape: f32[16,32], index: 4, kind: input, shape index: {}]
  %s5 = inlined_call_operand.vmem [shape: f32[16,32], index: 5, kind: input, shape index: {}]
  %s6 = inlined_call_operand.vmem [shape: f32[64,64], index: 6, kind: input, shape index: {}]
  %s7 = inlined_call_operand.vmem [shape: f32[64,32], index: 7, kind: input, shape index: {}]
  %s8 = inlined_call_operand.hbm [shape: bf16[32,32], index: 8, kind: input, shape index: {}]
  %s9 = inlined_call_operand.vmem [shape: f32[1,128], index: 9, kind: input, shape index: {}]
  %s10 = inlined_call_operand.vmem [shape: bf16[128,32], index: 10, kind: input, shape index: {}]
  %s11 = inlined_call_operand.vmem [shape: f32[1,32], index: 11, kind: input, shape index: {}]
  %s12 = inlined_call_operand.hbm [shape: f32[16,32], index: 12, kind: output, shape index: {}]
  %s13 = sld [smem:[#allocation0]]
  $region66: #{tpu_custom_call.1} parent=0
    _
  %s15 = ssub.s32 1, %s13
  %s16 = scalar_select 0, %s15, %s13
  $region1: #{tpu_custom_call.1} parent=0
    #allocation2 [shape = 'u8[512]{0}', space=vmem, size = 0x400, scoped, tag = 'input window, operand 1, single buffered']
    #allocation3 [shape = 's32[1]{0}', space=sflag, size = 0x4, scoped, tag = 'scoped memory for tpu_custom_call.1']
    #allocation4 [shape = 's32[1]{0}', space=sflag, size = 0x4, scoped, tag = 'scoped memory for tpu_custom_call.1']
    #allocation5 [shape = 'u8[8192]{0}', space=vmem, size = 0x2000, scoped, tag = 'input window, operand 8, single buffered']
    #allocation6 [shape = 's32[1]{0}', space=sflag, size = 0x4, scoped, tag = 'scoped memory for tpu_custom_call.1']
    #allocation7 [shape = 'u8[8192]{0}', space=vmem, size = 0x2000, scoped, tag = 'output window, operand 0, single buffered']
    %17 = vsyncpa [#allocation3], 0
    %18 = vsyncpa [#allocation6], 0
    %19 = vsyncpa [#allocation4], 0
    // Predicated region
    $region2: #{tpu_custom_call.1} parent=1 // pred_check
      _
    $region3: #{tpu_custom_call.1} parent=1 // pred_check_branch
      %21 = sbr.rel (0) target = $region5
    $region4: #{tpu_custom_call.1} parent=1 // pred_region
      _
    $region5: #{tpu_custom_call.1} parent=1 // pred_fallthru
      _
    // Predicated region
    $region6: #{tpu_custom_call.1} parent=1 // pred_check
      _
    $region7: #{tpu_custom_call.1} parent=1 // pred_check_branch
      %23 = sbr.rel (0) target = $region9
    $region8: #{tpu_custom_call.1} parent=1 // pred_region
      %25 = vsyncadd [#allocation3], 0
      %s27 = sshll.u32 %s1, 4
      %s28 = int_to_ptr.hbm [resolvable:$true] %s27
      %s29 = sshll.u32 [#allocation2], 4
      %s30 = int_to_ptr.vmem [resolvable:$true] %s29
      %32 = dma.hbm_to_vmem [thread:$0]  %s28, 16, %s30, [#allocation3]
    $region9: #{tpu_custom_call.1} parent=1 // pred_fallthru
      _
    // Predicated region
    $region10: #{tpu_custom_call.1} parent=1 // pred_check
      _
    $region11: #{tpu_custom_call.1} parent=1 // pred_check_branch
      %34 = sbr.rel (0) target = $region13
    $region12: #{tpu_custom_call.1} parent=1 // pred_region
      _
    $region13: #{tpu_custom_call.1} parent=1 // pred_fallthru
      _
    // Predicated region
    $region14: #{tpu_custom_call.1} parent=1 // pred_check
      _
    $region15: #{tpu_custom_call.1} parent=1 // pred_check_branch
      %36 = sbr.rel (0) target = $region17
    $region16: #{tpu_custom_call.1} parent=1 // pred_region
      _
    $region17: #{tpu_custom_call.1} parent=1 // pred_fallthru
      _
    // Predicated region
    $region18: #{tpu_custom_call.1} parent=1 // pred_check
      _
    $region19: #{tpu_custom_call.1} parent=1 // pred_check_branch
      %38 = sbr.rel (0) target = $region21
    $region20: #{tpu_custom_call.1} parent=1 // pred_region
      _
    $region21: #{tpu_custom_call.1} parent=1 // pred_fallthru
      _
    // Predicated region
    $region22: #{tpu_custom_call.1} parent=1 // pred_check
      _
    $region23: #{tpu_custom_call.1} parent=1 // pred_check_branch
      %40 = sbr.rel (0) target = $region25
    $region24: #{tpu_custom_call.1} parent=1 // pred_region
      _
    $region25: #{tpu_custom_call.1} parent=1 // pred_fallthru
      _
    // Predicated region
    $region26: #{tpu_custom_call.1} parent=1 // pred_check
      _
    $region27: #{tpu_custom_call.1} parent=1 // pred_check_branch
      %42 = sbr.rel (0) target = $region29
    $region28: #{tpu_custom_call.1} parent=1 // pred_region
      _
    $region29: #{tpu_custom_call.1} parent=1 // pred_fallthru
      _
    // Predicated region
    $region30: #{tpu_custom_call.1} parent=1 // pred_check
      _
    $region31: #{tpu_custom_call.1} parent=1 // pred_check_branch
      %44 = sbr.rel (0) target = $region33
    $region32: #{tpu_custom_call.1} parent=1 // pred_region
      _
    $region33: #{tpu_custom_call.1} parent=1 // pred_fallthru
      _
    // Predicated region
    $region34: #{tpu_custom_call.1} parent=1 // pred_check
      _
    $region35: #{tpu_custom_call.1} parent=1 // pred_check_branch
      %46 = sbr.rel (0) target = $region37
    $region36: #{tpu_custom_call.1} parent=1 // pred_region
      %48 = vsyncadd [#allocation6], 0
      %s49 = sshll.u32 %s8, 4
      %s50 = int_to_ptr.hbm [resolvable:$true] %s49
      %s51 = sshll.u32 [#allocation5], 4
      %s52 = int_to_ptr.vmem [resolvable:$true] %s51
      %57 = dma.hbm_to_vmem [thread:$0]  %s50, 256, %s52, [#allocation6], 64, 64, 4
    $region37: #{tpu_custom_call.1} parent=1 // pred_fallthru
      _
    // Predicated region
    $region38: #{tpu_custom_call.1} parent=1 // pred_check
      _
    $region39: #{tpu_custom_call.1} parent=1 // pred_check_branch
      %59 = sbr.rel (0) target = $region41
    $region40: #{tpu_custom_call.1} parent=1 // pred_region
      _
    $region41: #{tpu_custom_call.1} parent=1 // pred_fallthru
      _
    // Predicated region
    $region42: #{tpu_custom_call.1} parent=1 // pred_check
      _
    $region43: #{tpu_custom_call.1} parent=1 // pred_check_branch
      %61 = sbr.rel (0) target = $region45
    $region44: #{tpu_custom_call.1} parent=1 // pred_region
      _
    $region45: #{tpu_custom_call.1} parent=1 // pred_fallthru
      _
    // Predicated region
    $region46: #{tpu_custom_call.1} parent=1 // pred_check
      _
    $region47: #{tpu_custom_call.1} parent=1 // pred_check_branch
      %63 = sbr.rel (0) target = $region49
    $region48: #{tpu_custom_call.1} parent=1 // pred_region
      _
    $region49: #{tpu_custom_call.1} parent=1 // pred_fallthru
      _
    // Predicated region
    $region50: #{tpu_custom_call.1} parent=1 // pred_check
      _
    $region51: #{tpu_custom_call.1} parent=1 // pred_check_branch
      %65 = sbr.rel (0) target = $region53
    $region52: #{tpu_custom_call.1} parent=1 // pred_region
      %67 = dma.done [#allocation3], 16
    $region53: #{tpu_custom_call.1} parent=1 // pred_fallthru
      _
    // Predicated region
    $region54: #{tpu_custom_call.1} parent=1 // pred_check
      _
    $region55: #{tpu_custom_call.1} parent=1 // pred_check_branch
      %69 = sbr.rel (0) target = $region57
    $region56: #{tpu_custom_call.1} parent=1 // pred_region
      %71 = dma.done [#allocation6], 256
    $region57: #{tpu_custom_call.1} parent=1 // pred_fallthru
      _
    %v73 = vld [vmem:[%s0] sm:$0xff]
    %v74 = vld [vmem:[%s0 + $0x8] sm:$0xff]
    %vm75 = vcmask 261120
    %v76 = vsel %vm75, %v73, 0.0
    %77 = vadd.xlane.f32.xlu0 %v76
    %v78 = vpop.xlane.xlu0 %77
    %v79 = vsel %vm75, %v74, 0.0
    %80 = vadd.xlane.f32.xlu0 %v79
    %v81 = vpop.xlane.xlu0 %80
    %v82 = vrcp.pop 32.0
    %v83 = vmul.f32 32.0, %v82
    %v84 = vsub.f32 1.0, %v83
    %v85 = vmul.f32 %v82, %v84
    %v86 = vadd.f32 %v82, %v85
    %vm87 = vweird.f32 %v82
    %v88 = vsel %vm87, %v82, %v86
    %v89 = vmul.f32 %v78, %v88
    %v90 = vmul.f32 %v81, %v88
    %v91 = vsub.f32 %v73, %v89
    %v92 = vsub.f32 %v74, %v90
    %v93 = vmul.f32 %v91, %v91
    %v94 = vmul.f32 %v92, %v92
    %v95 = vsel %vm75, %v93, 0.0
    %96 = vadd.xlane.f32.xlu0 %v95
    %v97 = vpop.xlane.xlu0 %96
    %v98 = vsel %vm75, %v94, 0.0
    %99 = vadd.xlane.f32.xlu0 %v98
    %v100 = vpop.xlane.xlu0 %99
    %v101 = vmul.f32 %v97, %v88
    %v102 = vmul.f32 %v100, %v88
    %v103 = vadd.f32 %v101, 1e-05
    %v104 = vadd.f32 %v102, 1e-05
    %v105 = vrsqrt.pop %v103
    %v106 = vmul.f32 %v105, %v103
    %v107 = vmul.f32 %v106, %v105
    %v108 = vmul.f32 0.5, %v107
    %v109 = vsub.f32 1.5, %v108
    %v110 = vmul.f32 %v105, %v109
    %vm111 = vweird.f32 %v103
    %vm112 = vweird.f32 %v105
    %vm113 = vmor %vm111, %vm112
    %v114 = vsel %vm113, %v105, %v110
    %v115 = vrsqrt.pop %v104
    %v116 = vmul.f32 %v115, %v104
    %v117 = vmul.f32 %v116, %v115
    %v118 = vmul.f32 0.5, %v117
    %v119 = vsub.f32 1.5, %v118
    %v120 = vmul.f32 %v115, %v119
    %vm121 = vweird.f32 %v104
    %vm122 = vweird.f32 %v115
    %vm123 = vmor %vm121, %vm122
    %v124 = vsel %vm123, %v115, %v120
    %v125 = vmul.f32 %v91, %v114
    %v126 = vmul.f32 %v92, %v124
    %v127 = vld [vmem:[#allocation2] sm:$0x1]
    %v129 = vperm.slane %v127, 0
    %v131 = vmul.f32 %v125, %v129
    %v132 = vmul.f32 %v126, %v129
    %v133 = vld [vmem:[%s2] sm:$0x1]
    %v135 = vperm.slane %v133, 0
    %v137 = vadd.f32 %v131, %v135
    %v138 = vadd.f32 %v132, %v135
    %v139 = vpack.c.bf16 %v138, %v137
    %v140 = vld [vmem:[%s3] sm:$0xff]
    %v141 = vld [vmem:[%s3 + $0x8] sm:$0xf]
    %v142 = vld [vmem:[%s3 + $0xc] sm:$0xff]
    %v143 = vld [vmem:[%s3 + $0x14] sm:$0xf]
    %v144 = vld [vmem:[%s3 + $0x18] sm:$0xff]
    %v145 = vld [vmem:[%s3 + $0x20] sm:$0xf]
    %v146 = vld [vmem:[%s3 + $0x24] sm:$0xff]
    %v147 = vld [vmem:[%s3 + $0x2c] sm:$0xf]
    %v156 = vunpack.c.l.b16 %v140
    %v157 = vunpack.c.h.b16 %v140
    %v158 = vunpack.c.l.b16 %v141
    %v159 = vunpack.c.l.b16 %v142
    %v160 = vunpack.c.h.b16 %v142
    %v161 = vunpack.c.l.b16 %v143
    %v162 = vunpack.c.l.b16 %v144
    %v163 = vunpack.c.h.b16 %v144
    %v164 = vunpack.c.l.b16 %v145
    %v165 = vunpack.c.l.b16 %v146
    %v166 = vunpack.c.h.b16 %v146
    %v167 = vunpack.c.l.b16 %v147
    %v168 = vpack.c.b16 %v159, %v156
    %v169 = vpack.c.b16 %v160, %v157
    %v170 = vpack.c.b16 %v161, %v158
    %v171 = vpack.c.b16 %v165, %v162
    %v172 = vpack.c.b16 %v166, %v163
    %v173 = vpack.c.b16 %v167, %v164
    %v181 = vsel %vm75, %v139, 0
    %183 = vmatpush.bf16.msra.mxu0 0
    %184 = vmatpush.bf16.msra.mxu0 0
    %185 = vmatpush.bf16.msra.mxu0 0
    %186 = vmatpush.bf16.msra.mxu0 0
    %187 = vmatpush.bf16.msra.mxu0 0
    %188 = vmatpush.bf16.msra.mxu0 0
    %189 = vmatpush.bf16.msra.mxu0 %v171
    %190 = vmatpush.bf16.msra.mxu0 %v168
    %191 = vmatmul.bf16.gmra.mxu0 %v181
    %v192 = vpop.f32.mrf.mxu0
    %v193 = vadd.f32 0.0, %v192
    %v194 = vpop.f32.mrf.mxu0
    %v195 = vadd.f32 0.0, %v194
    %196 = vdwg.mxu0
    %197 = vmatpush.bf16.msra.mxu0 0
    %198 = vmatpush.bf16.msra.mxu0 0
    %199 = vmatpush.bf16.msra.mxu0 0
    %200 = vmatpush.bf16.msra.mxu0 0
    %201 = vmatpush.bf16.msra.mxu0 0
    %202 = vmatpush.bf16.msra.mxu0 0
    %203 = vmatpush.bf16.msra.mxu0 %v172
    %204 = vmatpush.bf16.msra.mxu0 %v169
    %205 = vmatmul.bf16.gmra.mxu0 %v181
    %v206 = vpop.f32.mrf.mxu0
    %v207 = vadd.f32 0.0, %v206
    %v208 = vpop.f32.mrf.mxu0
    %v209 = vadd.f32 0.0, %v208
    %210 = vdwg.mxu0
    %211 = vmatpush.bf16.msra.mxu0 0
    %212 = vmatpush.bf16.msra.mxu0 0
    %213 = vmatpush.bf16.msra.mxu0 0
    %214 = vmatpush.bf16.msra.mxu0 0
    %215 = vmatpush.bf16.msra.mxu0 0
    %216 = vmatpush.bf16.msra.mxu0 0
    %217 = vmatpush.bf16.msra.mxu0 %v173
    %218 = vmatpush.bf16.msra.mxu0 %v170
    %219 = vmatmul.bf16.gmra.mxu0 %v181
    %v220 = vpop.f32.mrf.mxu0
    %v221 = vadd.f32 0.0, %v220
    %v222 = vpop.f32.mrf.mxu0
    %v223 = vadd.f32 0.0, %v222
    %224 = vdwg.mxu0
    %v225 = vld [vmem:[%s9] sm:$0x1]
    %v227 = vperm.slane %v225, 0
    %v229 = vadd.f32 %v193, %v227
    %v230 = vadd.f32 %v195, %v227
    %v231 = vld [vmem:[%s4] sm:$0xff]
    %v232 = vld [vmem:[%s4 + $0x8] sm:$0xff]
    %v233 = vld [vmem:[%s5] sm:$0xff]
    %v234 = vld [vmem:[%s5 + $0x8] sm:$0xff]
    %v235 = vmul.f32 %v207, %v233
    %v236 = vmul.f32 %v209, %v234
    %239 = vrot.lane.b32.xlu0 %v231, 96
    %v240 = vpop.permute.xlu0 %239
    %241 = vrot.lane.b32.xlu0 %v232, 96
    %v242 = vpop.permute.xlu0 %241
    %v245 = vmul.f32 %v207, %v240
    %v246 = vmul.f32 %v209, %v242
    %249 = vrot.lane.b32.xlu0 %v245, 32
    %v250 = vpop.permute.xlu0 %249
    %251 = vrot.lane.b32.xlu0 %v246, 32
    %v252 = vpop.permute.xlu0 %251
    %v255 = vadd.f32 %v235, %v250
    %v256 = vadd.f32 %v236, %v252
    %259 = vrot.lane.b32.xlu0 %v233, 32
    %v260 = vpop.permute.xlu0 %259
    %261 = vrot.lane.b32.xlu0 %v234, 32
    %v262 = vpop.permute.xlu0 %261
    %v265 = vmul.f32 %v207, %v260
    %v266 = vmul.f32 %v209, %v262
    %v267 = vmul.f32 %v221, %v231
    %v268 = vmul.f32 %v223, %v232
    %271 = vrot.lane.b32.xlu0 %v267, 32
    %v272 = vpop.permute.xlu0 %271
    %273 = vrot.lane.b32.xlu0 %v268, 32
    %v274 = vpop.permute.xlu0 %273
    %v277 = vadd.f32 %v265, %v272
    %v278 = vadd.f32 %v266, %v274
    %v279 = vld [vmem:[%s7] sm:$0xff]
    %v280 = vld [vmem:[%s7 + $0x8] sm:$0xff]
    %v281 = vld [vmem:[%s7 + $0x10] sm:$0xff]
    %v282 = vld [vmem:[%s7 + $0x18] sm:$0xff]
    %v283 = vld [vmem:[%s7 + $0x20] sm:$0xff]
    %v284 = vld [vmem:[%s7 + $0x28] sm:$0xff]
    %v285 = vld [vmem:[%s7 + $0x30] sm:$0xff]
    %v286 = vld [vmem:[%s7 + $0x38] sm:$0xff]
    %v287 = vpack.c.bf16 %v255, %v255
    %v288 = vpack.c.bf16 %v256, %v256
    %v291 = vunpack.c.l.b16 %v287
    %v292 = vunpack.c.l.b16 %v288
    %v293 = vpack.c.b16 %v292, %v291
    %302 = vrot.lane.b32.xlu0 %v279, 32
    %v303 = vpop.permute.xlu0 %302
    %304 = vrot.lane.b32.xlu0 %v280, 32
    %v305 = vpop.permute.xlu0 %304
    %306 = vrot.lane.b32.xlu0 %v281, 32
    %v307 = vpop.permute.xlu0 %306
    %308 = vrot.lane.b32.xlu0 %v282, 32
    %v309 = vpop.permute.xlu0 %308
    %310 = vrot.lane.b32.xlu0 %v283, 32
    %v311 = vpop.permute.xlu0 %310
    %312 = vrot.lane.b32.xlu0 %v284, 32
    %v313 = vpop.permute.xlu0 %312
    %314 = vrot.lane.b32.xlu0 %v285, 32
    %v315 = vpop.permute.xlu0 %314
    %316 = vrot.lane.b32.xlu0 %v286, 32
    %v317 = vpop.permute.xlu0 %316
    %v326 = vmul.f32 %v277, %v303
    %v327 = vmul.f32 %v278, %v305
    %v328 = vmul.f32 %v277, %v307
    %v329 = vmul.f32 %v278, %v309
    %v330 = vmul.f32 %v277, %v311
    %v331 = vmul.f32 %v278, %v313
    %v332 = vmul.f32 %v277, %v315
    %v333 = vmul.f32 %v278, %v317
    %v334 = vpack.c.bf16 %v327, %v326
    %v335 = vpack.c.bf16 %v329, %v328
    %v336 = vpack.c.bf16 %v331, %v330
    %v337 = vpack.c.bf16 %v333, %v332
    %v338 = vld [vmem:[%s6] sm:$0xff]
    %v339 = vld [vmem:[%s6 + $0x8] sm:$0xff]
    %v340 = vld [vmem:[%s6 + $0x10] sm:$0xff]
    %v341 = vld [vmem:[%s6 + $0x18] sm:$0xff]
    %v342 = vld [vmem:[%s6 + $0x20] sm:$0xff]
    %v343 = vld [vmem:[%s6 + $0x28] sm:$0xff]
    %v344 = vld [vmem:[%s6 + $0x30] sm:$0xff]
    %v345 = vld [vmem:[%s6 + $0x38] sm:$0xff]
    %350 = vrot.lane.b32.xlu0 %v334, 96
    %v351 = vpop.permute.xlu0 %350
    %352 = vrot.lane.b32.xlu0 %v335, 96
    %v353 = vpop.permute.xlu0 %352
    %354 = vrot.lane.b32.xlu0 %v336, 96
    %v355 = vpop.permute.xlu0 %354
    %356 = vrot.lane.b32.xlu0 %v337, 96
    %v357 = vpop.permute.xlu0 %356
    %v359 = vsel %vm75, %v293, 0
    %v362 = vsel %vm75, %v351, 0
    %v365 = vsel %vm75, %v353, 0
    %v368 = vsel %vm75, %v355, 0
    %v371 = vsel %vm75, %v357, 0
    %373 = vmatpush.bf16.xpose.msra.mxu0 0
    %374 = vmatpush.bf16.xpose.msra.mxu0 0
    %375 = vmatpush.bf16.xpose.msra.mxu0 0
    %376 = vmatpush.bf16.xpose.msra.mxu0 0
    %377 = vmatpush.bf16.xpose.msra.mxu0 %v371
    %378 = vmatpush.bf16.xpose.msra.mxu0 %v368
    %379 = vmatpush.bf16.xpose.msra.mxu0 %v365
    %380 = vmatpush.bf16.xpose.msra.mxu0 %v362
    %381 = vmatmul.bf16.gmra.mxu0 %v359
    %v382 = vpop.f32.mrf.mxu0
    %v383 = vadd.f32 %v338, %v382
    %v384 = vpop.f32.mrf.mxu0
    %v385 = vadd.f32 %v339, %v384
    %386 = vmatmul.bf16.gmra.mxu0 %v359
    %v387 = vpop.f32.mrf.mxu0
    %v388 = vadd.f32 %v340, %v387
    %v389 = vpop.f32.mrf.mxu0
    %v390 = vadd.f32 %v341, %v389
    %391 = vmatmul.bf16.gmra.mxu0 %v359
    %v392 = vpop.f32.mrf.mxu0
    %v393 = vadd.f32 %v342, %v392
    %v394 = vpop.f32.mrf.mxu0
    %v395 = vadd.f32 %v343, %v394
    %396 = vmatmul.bf16.gmra.mxu0 %v359
    %v397 = vpop.f32.mrf.mxu0
    %v398 = vadd.f32 %v344, %v397
    %v399 = vpop.f32.mrf.mxu0
    %v400 = vadd.f32 %v345, %v399
    %401 = vdwg.mxu0
    %vm402 = vcmask 523264
    %v403 = vsel %vm402, %v383, -inf
    %404 = vmax.xlane.f32.xlu0 %v403
    %v405 = vpop.xlane.xlu0 %404
    %v406 = vsel %vm402, %v385, -inf
    %407 = vmax.xlane.f32.xlu0 %v406
    %v408 = vpop.xlane.xlu0 %407
    %v409 = vsel %vm402, %v388, -inf
    %410 = vmax.xlane.f32.xlu0 %v409
    %v411 = vpop.xlane.xlu0 %410
    %v412 = vsel %vm402, %v390, -inf
    %413 = vmax.xlane.f32.xlu0 %v412
    %v414 = vpop.xlane.xlu0 %413
    %v415 = vsel %vm402, %v393, -inf
    %416 = vmax.xlane.f32.xlu0 %v415
    %v417 = vpop.xlane.xlu0 %416
    %v418 = vsel %vm402, %v395, -inf
    %419 = vmax.xlane.f32.xlu0 %v418
    %v420 = vpop.xlane.xlu0 %419
    %v421 = vsel %vm402, %v398, -inf
    %422 = vmax.xlane.f32.xlu0 %v421
    %v423 = vpop.xlane.xlu0 %422
    %v424 = vsel %vm402, %v400, -inf
    %425 = vmax.xlane.f32.xlu0 %v424
    %v426 = vpop.xlane.xlu0 %425
    %v427 = vsub.f32 %v383, %v405
    %v428 = vsub.f32 %v385, %v408
    %v429 = vsub.f32 %v388, %v411
    %v430 = vsub.f32 %v390, %v414
    %v431 = vsub.f32 %v393, %v417
    %v432 = vsub.f32 %v395, %v420
    %v433 = vsub.f32 %v398, %v423
    %v434 = vsub.f32 %v400, %v426
    %v435 = vmul.f32 %v427, 1.442695
    %v436 = vpow.pop %v435
    %v437 = vmul.f32 %v428, 1.442695
    %v438 = vpow.pop %v437
    %v439 = vmul.f32 %v429, 1.442695
    %v440 = vpow.pop %v439
    %v441 = vmul.f32 %v430, 1.442695
    %v442 = vpow.pop %v441
    %v443 = vmul.f32 %v431, 1.442695
    %v444 = vpow.pop %v443
    %v445 = vmul.f32 %v432, 1.442695
    %v446 = vpow.pop %v445
    %v447 = vmul.f32 %v433, 1.442695
    %v448 = vpow.pop %v447
    %v449 = vmul.f32 %v434, 1.442695
    %v450 = vpow.pop %v449
    %v451 = vsel %vm402, %v436, 0.0
    %452 = vadd.xlane.f32.xlu0 %v451
    %v453 = vpop.xlane.xlu0 %452
    %v454 = vsel %vm402, %v438, 0.0
    %455 = vadd.xlane.f32.xlu0 %v454
    %v456 = vpop.xlane.xlu0 %455
    %v457 = vsel %vm402, %v440, 0.0
    %458 = vadd.xlane.f32.xlu0 %v457
    %v459 = vpop.xlane.xlu0 %458
    %v460 = vsel %vm402, %v442, 0.0
    %461 = vadd.xlane.f32.xlu0 %v460
    %v462 = vpop.xlane.xlu0 %461
    %v463 = vsel %vm402, %v444, 0.0
    %464 = vadd.xlane.f32.xlu0 %v463
    %v465 = vpop.xlane.xlu0 %464
    %v466 = vsel %vm402, %v446, 0.0
    %467 = vadd.xlane.f32.xlu0 %v466
    %v468 = vpop.xlane.xlu0 %467
    %v469 = vsel %vm402, %v448, 0.0
    %470 = vadd.xlane.f32.xlu0 %v469
    %v471 = vpop.xlane.xlu0 %470
    %v472 = vsel %vm402, %v450, 0.0
    %473 = vadd.xlane.f32.xlu0 %v472
    %v474 = vpop.xlane.xlu0 %473
    %v475 = vrcp.pop %v453
    %v476 = vrcp.pop %v456
    %v477 = vrcp.pop %v459
    %v478 = vrcp.pop %v462
    %v479 = vrcp.pop %v465
    %v480 = vrcp.pop %v468
    %v481 = vrcp.pop %v471
    %v482 = vrcp.pop %v474
    %v483 = vmul.f32 %v436, %v475
    %v484 = vmul.f32 %v438, %v476
    %v485 = vmul.f32 %v440, %v477
    %v486 = vmul.f32 %v442, %v478
    %v487 = vmul.f32 %v444, %v479
    %v488 = vmul.f32 %v446, %v480
    %v489 = vmul.f32 %v448, %v481
    %v490 = vmul.f32 %v450, %v482
    %v491 = vpack.c.bf16 %v207, %v207
    %v492 = vpack.c.bf16 %v209, %v209
    %v495 = vunpack.c.l.b16 %v491
    %v496 = vunpack.c.l.b16 %v492
    %v497 = vpack.c.b16 %v496, %v495
    %v498 = vpack.c.bf16 %v484, %v483
    %v499 = vpack.c.bf16 %v486, %v485
    %v500 = vpack.c.bf16 %v488, %v487
    %v501 = vpack.c.bf16 %v490, %v489
    %502 = vrot.lane.b32.xlu0 %v497, 64
    %v503 = vpop.permute.xlu0 %502
    %v506 = vsel %vm402, %v498, 0
    %v509 = vsel %vm402, %v499, 0
    %v512 = vsel %vm402, %v500, 0
    %v515 = vsel %vm402, %v501, 0
    %517 = vmatpush.bf16.msra.mxu0 0
    %518 = vmatpush.bf16.msra.mxu0 0
    %519 = vmatpush.bf16.msra.mxu0 0
    %520 = vmatpush.bf16.msra.mxu0 0
    %521 = vmatpush.bf16.msra.mxu0 %v503
    %522 = vmatpush.bf16.msra.mxu0 %v503
    %523 = vmatpush.bf16.msra.mxu0 %v503
    %524 = vmatpush.bf16.msra.mxu0 %v503
    %525 = vmatmul.bf16.gmra.mxu0 %v506
    %v526 = vpop.f32.mrf.mxu0
    %v527 = vadd.f32 0.0, %v526
    %v528 = vpop.f32.mrf.mxu0
    %v529 = vadd.f32 0.0, %v528
    %530 = vmatmul.bf16.gmra.mxu0 %v509
    %v531 = vpop.f32.mrf.mxu0
    %v532 = vadd.f32 0.0, %v531
    %v533 = vpop.f32.mrf.mxu0
    %v534 = vadd.f32 0.0, %v533
    %535 = vmatmul.bf16.gmra.mxu0 %v512
    %v536 = vpop.f32.mrf.mxu0
    %v537 = vadd.f32 0.0, %v536
    %v538 = vpop.f32.mrf.mxu0
    %v539 = vadd.f32 0.0, %v538
    %540 = vmatmul.bf16.gmra.mxu0 %v515
    %v541 = vpop.f32.mrf.mxu0
    %v542 = vadd.f32 0.0, %v541
    %v543 = vpop.f32.mrf.mxu0
    %v544 = vadd.f32 0.0, %v543
    %545 = vdwg.mxu0
    %v546 = vmul.f32 %v527, %v279
    %v547 = vmul.f32 %v529, %v280
    %v548 = vmul.f32 %v532, %v281
    %v549 = vmul.f32 %v534, %v282
    %v550 = vmul.f32 %v537, %v283
    %v551 = vmul.f32 %v539, %v284
    %v552 = vmul.f32 %v542, %v285
    %v553 = vmul.f32 %v544, %v286
    %v554 = vadd.f32 %v546, %v548
    %v555 = vadd.f32 %v547, %v549
    %v556 = vadd.f32 %v554, %v550
    %v557 = vadd.f32 %v555, %v551
    %v558 = vadd.f32 %v556, %v552
    %v559 = vadd.f32 %v557, %v553
    %v560 = vpack.c.bf16 %v559, %v558
    %v561 = vld [vmem:[#allocation5] sm:$0xf]
    %v562 = vld [vmem:[#allocation5 + $0x4] sm:$0xf]
    %v563 = vld [vmem:[#allocation5 + $0x8] sm:$0xf]
    %v564 = vld [vmem:[#allocation5 + $0xc] sm:$0xf]
    %v565 = vmul.f32 %v229, 0.5
    %v566 = vmul.f32 %v230, 0.5
    %v567 = vmul.f32 %v229, 0.044715
    %v568 = vmul.f32 %v230, 0.044715
    %v569 = vmul.f32 %v567, %v229
    %v570 = vmul.f32 %v568, %v230
    %v571 = vmul.f32 %v569, %v229
    %v572 = vmul.f32 %v570, %v230
    %v573 = vadd.f32 %v229, %v571
    %v574 = vadd.f32 %v230, %v572
    %v575 = vmul.f32 %v573, 0.7978846
    %v576 = vmul.f32 %v574, 0.7978846
    %v577 = vtanh.pop %v575
    %v578 = vtanh.pop %v576
    %v579 = vadd.f32 %v577, 1.0
    %v580 = vadd.f32 %v578, 1.0
    %v581 = vmul.f32 %v565, %v579
    %v582 = vmul.f32 %v566, %v580
    %v583 = vpack.c.bf16 %v582, %v581
    %v584 = vld [vmem:[%s10] sm:$0xf]
    %v585 = vld [vmem:[%s10 + $0x4] sm:$0xf]
    %v586 = vld [vmem:[%s10 + $0x8] sm:$0xf]
    %v587 = vld [vmem:[%s10 + $0xc] sm:$0xf]
    %v588 = vld [vmem:[%s10 + $0x10] sm:$0xf]
    %v589 = vld [vmem:[%s10 + $0x14] sm:$0xf]
    %v590 = vld [vmem:[%s10 + $0x18] sm:$0xf]
    %v591 = vld [vmem:[%s10 + $0x1c] sm:$0xf]
    %v592 = vld [vmem:[%s10 + $0x20] sm:$0xf]
    %v593 = vld [vmem:[%s10 + $0x24] sm:$0xf]
    %v594 = vld [vmem:[%s10 + $0x28] sm:$0xf]
    %v595 = vld [vmem:[%s10 + $0x2c] sm:$0xf]
    %v596 = vld [vmem:[%s10 + $0x30] sm:$0xf]
    %v597 = vld [vmem:[%s10 + $0x34] sm:$0xf]
    %v598 = vld [vmem:[%s10 + $0x38] sm:$0xf]
    %v599 = vld [vmem:[%s10 + $0x3c] sm:$0xf]
    %v600 = vld [vmem:[%s11] sm:$0x1]
    %v602 = vperm.slane %v600, 0
    %v620 = vunpack.c.l.b16 %v584
    %v621 = vunpack.c.l.b16 %v585
    %v622 = vunpack.c.l.b16 %v586
    %v623 = vunpack.c.l.b16 %v587
    %v624 = vunpack.c.l.b16 %v588
    %v625 = vunpack.c.l.b16 %v589
    %v626 = vunpack.c.l.b16 %v590
    %v627 = vunpack.c.l.b16 %v591
    %v628 = vunpack.c.l.b16 %v592
    %v629 = vunpack.c.l.b16 %v593
    %v630 = vunpack.c.l.b16 %v594
    %v631 = vunpack.c.l.b16 %v595
    %v632 = vunpack.c.l.b16 %v596
    %v633 = vunpack.c.l.b16 %v597
    %v634 = vunpack.c.l.b16 %v598
    %v635 = vunpack.c.l.b16 %v599
    %v636 = vpack.c.b16 %v621, %v620
    %v637 = vpack.c.b16 %v623, %v622
    %v638 = vpack.c.b16 %v625, %v624
    %v639 = vpack.c.b16 %v627, %v626
    %v640 = vpack.c.b16 %v629, %v628
    %v641 = vpack.c.b16 %v631, %v630
    %v642 = vpack.c.b16 %v633, %v632
    %v643 = vpack.c.b16 %v635, %v634
    %652 = vmatpush.bf16.msra.mxu0 %v643
    %653 = vmatpush.bf16.msra.mxu0 %v642
    %654 = vmatpush.bf16.msra.mxu0 %v641
    %655 = vmatpush.bf16.msra.mxu0 %v640
    %656 = vmatpush.bf16.msra.mxu0 %v639
    %657 = vmatpush.bf16.msra.mxu0 %v638
    %658 = vmatpush.bf16.msra.mxu0 %v637
    %659 = vmatpush.bf16.msra.mxu0 %v636
    %660 = vmatmul.bf16.gmra.mxu0 %v583
    %v661 = vpop.f32.mrf.mxu0
    %v662 = vadd.f32 %v602, %v661
    %v663 = vpop.f32.mrf.mxu0
    %v664 = vadd.f32 %v602, %v663
    %665 = vdwg.mxu0
    %v670 = vunpack.c.l.b16 %v561
    %v671 = vunpack.c.l.b16 %v562
    %v672 = vunpack.c.l.b16 %v563
    %v673 = vunpack.c.l.b16 %v564
    %v674 = vpack.c.b16 %v671, %v670
    %v675 = vpack.c.b16 %v673, %v672
    %v679 = vsel %vm75, %v560, 0
    %681 = vmatpush.bf16.msra.mxu0 0
    %682 = vmatpush.bf16.msra.mxu0 0
    %683 = vmatpush.bf16.msra.mxu0 0
    %684 = vmatpush.bf16.msra.mxu0 0
    %685 = vmatpush.bf16.msra.mxu0 0
    %686 = vmatpush.bf16.msra.mxu0 0
    %687 = vmatpush.bf16.msra.mxu0 %v675
    %688 = vmatpush.bf16.msra.mxu0 %v674
    %689 = vmatmul.bf16.gmra.mxu0 %v679
    %v690 = vpop.f32.mrf.mxu0
    %v691 = vadd.f32 %v662, %v690
    %v692 = vpop.f32.mrf.mxu0
    %v693 = vadd.f32 %v664, %v692
    %694 = vdwg.mxu0
    %v695 = vadd.f32 %v691, %v73
    %v696 = vadd.f32 %v693, %v74
    %697 = vst.msk [vmem:[#allocation7] sm:$0xff] %vm75, %v695
    %698 = vst.msk [vmem:[#allocation7 + $0x8] sm:$0xff] %vm75, %v696
    // Predicated region
    $region58: #{tpu_custom_call.1} parent=1 // pred_check
      _
    $region59: #{tpu_custom_call.1} parent=1 // pred_check_branch
      %700 = sbr.rel (0) target = $region61
    $region60: #{tpu_custom_call.1} parent=1 // pred_region
      %702 = vsyncadd [#allocation4], 0
      %s703 = sshll.u32 [#allocation7], 4
      %s704 = int_to_ptr.vmem [resolvable:$true] %s703
      %s705 = sshll.u32 %s12, 4
      %s706 = int_to_ptr.hbm [resolvable:$true] %s705
      %711 = dma.vmem_to_hbm [thread:$0]  %s704, 256, %s706, [#allocation4], 128, 128, 8
    $region61: #{tpu_custom_call.1} parent=1 // pred_fallthru
      _
    // Predicated region
    $region62: #{tpu_custom_call.1} parent=1 // pred_check
      _
    $region63: #{tpu_custom_call.1} parent=1 // pred_check_branch
      %713 = sbr.rel (0) target = $region65
    $region64: #{tpu_custom_call.1} parent=1 // pred_region
      %715 = dma.done [#allocation4], 256
    $region65: #{tpu_custom_call.1} parent=1 // pred_fallthru
      _
    %716 = vsyncpa [#allocation3], 1
    %717 = vsyncpa [#allocation6], 1
    %718 = vsyncpa [#allocation4], 1

</llo_original>
